<compile_context>
chip_gen: v6e
topology: v6e:2x2x1
jax: 0.10.0
libtpu: 0.0.40
codegen_flags: <defaults>
</compile_context>

<pallas_src>
import functools
import math

import jax
import jax.numpy as jnp
from jax import lax
from jax.experimental import pallas as pl
from jax.experimental.pallas import tpu as pltpu

# ---- module hyper-parameters (qubit_dict['pure_multi'] -> the only value
#      consistent with stride-2 2x2 patches and 2 angles per qubit) ----------
DEPTH = 1
N_QUBITS = 2
KERNEL_SIZE = N_QUBITS
_LANE = 128

# float32 preserves reference numerics; jnp.bfloat16 halves the dominant HBM
# input stream (angles) on v5e where the encoding phase is HBM-bound.
ANGLE_DTYPE = jnp.float32


def _round_up(v, m):
    return ((v + m - 1) // m) * m


def _pick_block_b(B, F, cp):
    """Batch tile: multiple of 8, capped so the per-step working set
    (double-buffered ang + logits blocks plus live f32 temporaries) stays
    well inside v7x's 64 MiB VMEM while leaving room for resident weights."""
    budget = 24 << 20
    bytes_per_row = 4 * (2 * F) * 2 + 4 * cp * 2 + 4 * 6 * F
    tb = budget // max(bytes_per_row, 1)
    tb = max(8, min(512, tb))
    tb = min(tb, _round_up(B, 8))
    return max(8, (tb // 8) * 8)


# ---------------------------------------------------------------------------
# Fused kernel (one batch block per grid step):
#   quantum patch encoding (elementwise trig chain, VPU/EUP)
#     -> fc1 -> LeakyReLU(0.1) -> fc2 (MXU)
#     -> numerically stable per-sample cross-entropy (padded rows masked).
#
#   ang   : [2, TB, F]  row 0 = RY angles, row 1 = RZ angles (patch-major /
#                       qubit-minor feature order on lanes)
#   trig  : [2*DEPTH or 4*DEPTH, F]  rows [cos(w_ry); sin(w_ry); (cos(w_rz);
#                       sin(w_rz) only when DEPTH > 1)], tiled per feature
#   w1:[F,H1P] b1:[1,H1P] w2:[H1P,CP] b2:[1,CP]  zero-padded to 128 lanes
#   lbl   : [TB, 1] int32 class labels
# outputs:
#   logits : [TB, CP]   (first `num_classes` columns are the real logits)
#   ploss  : [TB, 1]    per-sample CE, zero for batch-padding rows
# ---------------------------------------------------------------------------
def _fused_kernel(ang_ref, trig_ref, w1_ref, b1_ref, w2_ref, b2_ref, lbl_ref,
                  logits_ref, ploss_ref, *, num_classes, batch):
    a_ry = ang_ref[0].astype(jnp.float32)              # [TB, F]
    a_rz = ang_ref[1].astype(jnp.float32)

    # |0> --RY(a_ry)--RZ(a_rz)--> Bloch vector.  Only vz is observed at the
    # end and RZ never touches vz, so sin(a_rz)/vy are needed only when a
    # later (non-final) variational RZ layer can feed vy back into vx.
    sy0 = jnp.sin(a_ry)
    vz = jnp.cos(a_ry)
    vx = sy0 * jnp.cos(a_rz)
    vy = sy0 * jnp.sin(a_rz) if DEPTH > 1 else None

    for d in range(DEPTH):
        cy = trig_ref[d:d + 1, :]                      # [1, F] broadcast rows
        sy = trig_ref[DEPTH + d:DEPTH + d + 1, :]
        vx, vz = vx * cy + vz * sy, vz * cy - vx * sy
        if d + 1 < DEPTH:                              # final RZ never -> vz
            cz = trig_ref[2 * DEPTH + d:2 * DEPTH + d + 1, :]
            sz = trig_ref[3 * DEPTH + d:3 * DEPTH + d + 1, :]
            vx, vy = vx * cz - vy * sz, vx * sz + vy * cz

    feats = vz                                         # <PauliZ_q> per patch

    # MLP head on the MXU.  (On v5e only, casting feats/w1 to bf16 with an
    # f32 accumulator recovers ~4x on fc1; kept f32 to match the reference.)
    h = jnp.dot(feats, w1_ref[...], preferred_element_type=jnp.float32)
    h = h + b1_ref[...]
    h = jnp.where(h >= 0, h, 0.1 * h)                  # LeakyReLU(0.1)
    logits = jnp.dot(h, w2_ref[...], preferred_element_type=jnp.float32)
    logits = logits + b2_ref[...]
    logits_ref[...] = logits

    # Cross-entropy over the real classes only (padded columns masked out).
    col = lax.broadcasted_iota(jnp.int32, logits.shape, 1)
    masked = jnp.where(col < num_classes, logits,
                       jnp.full_like(logits, -1e30))
    m = jnp.max(masked, axis=-1, keepdims=True)
    lse = m + jnp.log(jnp.sum(jnp.exp(masked - m), axis=-1, keepdims=True))
    tgt = jnp.sum(jnp.where(col == lbl_ref[...], logits, 0.0),
                  axis=-1, keepdims=True)
    per_sample = lse - tgt                             # [TB, 1]

    # Zero out batch-padding rows so the wrapper can simply sum / B.
    tb = per_sample.shape[0]
    row = lax.broadcasted_iota(jnp.int32, per_sample.shape, 0)
    gid = pl.program_id(0) * tb + row
    ploss_ref[...] = jnp.where(gid < batch, per_sample, 0.0)


def multi_encoding_forward(x, y, params, num_classes):
    """MultiEncoding.forward(x, y) -> (mean CE loss, logits)."""
    if x.ndim < 4:
        x = x.reshape(x.shape[0], 1, x.shape[-2], x.shape[-1])
    B, C, H, W = x.shape
    # pure_multi: 2 qubits consume the 4 pixels of one single-channel 2x2 patch
    assert C == 1, "pure_multi encoding expects a single input channel"
    Hp, Wp = H // 2, W // 2
    F = Hp * Wp * N_QUBITS

    # RY/RZ angle planes in the feature layout the MLP consumes (patch-major,
    # qubit-minor on lanes) with the RY/RZ split as a leading axis.
    # TODO(synk): fold this patch reordering into the kernel (strided pl.ds /
    # pltpu.roll on a [TB,H,W] block) to avoid the extra HBM round-trip of
    # `ang` on memory-bound v5e/v6e.
    ang = x.reshape(B, Hp, 2, Wp, 2)                   # (b, i2, di, j2, dj)
    ang = jnp.transpose(ang, (4, 0, 1, 3, 2)).reshape(2, B, F)
    ang = ang.astype(ANGLE_DTYPE)                      # [0] = RY, [1] = RZ

    # Variational angles: cos/sin precomputed once and tiled per feature
    # (qubit of feature f is f % N_QUBITS).  cos/sin(w_rz) rows are only
    # needed (and only shipped) when DEPTH > 1 -- see dead-code note above.
    wq = params["w_quantum"]                           # [DEPTH, 2*N_QUBITS]
    reps = F // N_QUBITS
    w_ry = jnp.tile(wq[:, 0::2], (1, reps))            # [DEPTH, F]
    w_rz = jnp.tile(wq[:, 1::2], (1, reps))
    rows = [jnp.cos(w_ry), jnp.sin(w_ry)]
    if DEPTH > 1:
        rows += [jnp.cos(w_rz), jnp.sin(w_rz)]
    trig = jnp.concatenate(rows, axis=0).astype(jnp.float32)

    # Zero-pad the MLP to 128-wide lanes (works on all MXU generations).
    h1 = 2 * num_classes
    h1p = _round_up(h1, _LANE)
    cp = _round_up(num_classes, _LANE)
    w1p = jnp.pad(params["w1"], ((0, 0), (0, h1p - h1)))
    b1p = jnp.pad(params["b1"], ((0, 0), (0, h1p - h1)))
    w2p = jnp.pad(params["w2"], ((0, h1p - h1), (0, cp - num_classes)))
    b2p = jnp.pad(params["b2"], ((0, 0), (0, cp - num_classes)))

    # Batch-blocked grid (padded batch rows are masked out of the loss).
    tb = _pick_block_b(B, F, cp)
    bp = _round_up(B, tb)
    nb = bp // tb
    if bp > B:
        ang = jnp.pad(ang, ((0, 0), (0, bp - B), (0, 0)))
        y = jnp.pad(y, (0, bp - B))
    lbl = y.astype(jnp.int32).reshape(bp, 1)

    flops = 2 * bp * F * h1p + 2 * bp * h1p * cp + 10 * bp * F + 8 * bp * cp
    transc = 3 * bp * F + bp * cp
    bytes_acc = (ang.dtype.itemsize * 2 * bp * F
                 + 4 * (F * h1p + h1p * cp + h1p + cp + trig.size)
                 + 4 * bp + 4 * bp * cp + 4 * bp)

    kernel = functools.partial(_fused_kernel, num_classes=num_classes, batch=B)
    logits_p, ploss = pl.pallas_call(
        kernel,
        grid=(nb,),
        in_specs=[
            pl.BlockSpec((2, tb, F), lambda i: (0, i, 0)),      # angles
            pl.BlockSpec(trig.shape, lambda i: (0, 0)),         # resident
            pl.BlockSpec((F, h1p), lambda i: (0, 0)),            # resident
            pl.BlockSpec((1, h1p), lambda i: (0, 0)),
            pl.BlockSpec((h1p, cp), lambda i: (0, 0)),
            pl.BlockSpec((1, cp), lambda i: (0, 0)),
            pl.BlockSpec((tb, 1), lambda i: (i, 0)),             # labels
        ],
        out_specs=(
            pl.BlockSpec((tb, cp), lambda i: (i, 0)),            # logits
            pl.BlockSpec((tb, 1), lambda i: (i, 0)),             # per-sample CE
        ),
        out_shape=(
            jax.ShapeDtypeStruct((bp, cp), jnp.float32),
            jax.ShapeDtypeStruct((bp, 1), jnp.float32),
        ),
        compiler_params=pltpu.CompilerParams(
            dimension_semantics=("parallel",),
            vmem_limit_bytes=48 * 1024 * 1024,
        ),
        cost_estimate=pl.CostEstimate(
            flops=int(flops), transcendentals=int(transc),
            bytes_accessed=int(bytes_acc)),
    )(ang, trig, w1p, b1p, w2p, b2p, lbl)
    # TODO(synk): for very large F (big images) add an F-blocked "arbitrary"
    # reduction axis for fc1 (VMEM-scratch accumulator, pl.when init) so the
    # resident w1 and [TB,F] temporaries also fit v7x's 64 MiB VMEM.

    loss = jnp.sum(ploss) / B
    return loss, logits_p[:B, :num_classes]


def init_params(key, img_size, num_classes):
    half = img_size // 2
    f_in = N_QUBITS * half * half
    h1 = num_classes * 2
    k1, k2, k3, k4, k5 = jax.random.split(key, 5)

    kq = 2.0 * math.pi
    bound1 = 1.0 / math.sqrt(f_in)
    bound2 = 1.0 / math.sqrt(h1)
    return {
        # TorchLayer weights: shape (depth, 2*n_qubits)
        "w_quantum": jax.random.uniform(
            k1, (DEPTH, 2 * N_QUBITS), jnp.float32, 0.0, kq),
        # fc1 / fc2 stored as [in, out] for row-major matmul
        "w1": jax.random.uniform(k2, (f_in, h1), jnp.float32, -bound1, bound1),
        "b1": jax.random.uniform(k3, (1, h1), jnp.float32, -bound1, bound1),
        "w2": jax.random.uniform(k4, (h1, num_classes), jnp.float32,
                                 -bound2, bound2),
        "b2": jax.random.uniform(k5, (1, num_classes), jnp.float32,
                                 -bound2, bound2),
    }


if __name__ == "__main__":
    B, C, IMG, NUM_CLASSES = 2, 1, 16, 4

    key = jax.random.PRNGKey(0)
    kx, ky, kp = jax.random.split(key, 3)
    x = jax.random.normal(kx, (B, C, IMG, IMG), jnp.float32)
    y = jax.random.randint(ky, (B,), 0, NUM_CLASSES, jnp.int32)
    params = init_params(kp, IMG, NUM_CLASSES)

    loss, logits = jax.jit(
        lambda x, y, p: multi_encoding_forward(x, y, p, NUM_CLASSES)
    )(x, y, params)
    jax.block_until_ready((loss, logits))

    assert logits.shape == (B, NUM_CLASSES)
    assert loss.shape == ()
    assert bool(jnp.isfinite(loss))
    print("KERNEL_OK")
</pallas_src>

<mosaic_0001>
module attributes {stable_mosaic.version = 11 : i64} {
  func.func @_fused_kernel(%arg0: i32, %arg1: memref<2x8x128xf32, #tpu.memory_space<vmem>>, %arg2: memref<2x128xf32, #tpu.memory_space<vmem>>, %arg3: memref<128x128xf32, #tpu.memory_space<vmem>>, %arg4: memref<1x128xf32, #tpu.memory_space<vmem>>, %arg5: memref<128x128xf32, #tpu.memory_space<vmem>>, %arg6: memref<1x128xf32, #tpu.memory_space<vmem>>, %arg7: memref<8x1xi32, #tpu.memory_space<vmem>>, %arg8: memref<8x128xf32, #tpu.memory_space<vmem>>, %arg9: memref<8x1xf32, #tpu.memory_space<vmem>>) attributes {dimension_semantics = [#tpu.dimension_semantics<parallel>], iteration_bounds = array<i64: 1>, scalar_prefetch = 0 : i64, scratch_operands = 0 : i64, tpu.core_type = #tpu.core_type<tc>, window_params = [{transform_indices = @transform_0, window_bounds = array<i64: 2, 8, 128>}, {pipeline_mode = #tpu.pipeline_mode<synchronous>, transform_indices = @transform_1, window_bounds = array<i64: 2, 128>}, {pipeline_mode = #tpu.pipeline_mode<synchronous>, transform_indices = @transform_2, window_bounds = array<i64: 128, 128>}, {pipeline_mode = #tpu.pipeline_mode<synchronous>, transform_indices = @transform_3, window_bounds = array<i64: 1, 128>}, {pipeline_mode = #tpu.pipeline_mode<synchronous>, transform_indices = @transform_4, window_bounds = array<i64: 128, 128>}, {pipeline_mode = #tpu.pipeline_mode<synchronous>, transform_indices = @transform_5, window_bounds = array<i64: 1, 128>}, {transform_indices = @transform_6, window_bounds = array<i64: 8, 1>}, {transform_indices = @transform_7, window_bounds = array<i64: 8, 128>}, {transform_indices = @transform_8, window_bounds = array<i64: 8, 1>}]} {
    %c0 = arith.constant 0 : index
    %c0_0 = arith.constant 0 : index
    %c0_1 = arith.constant 0 : index
    %0 = vector.load %arg1[%c0, %c0_0, %c0_1] : memref<2x8x128xf32, #tpu.memory_space<vmem>>, vector<1x8x128xf32>
    %1 = vector.shape_cast %0 : vector<1x8x128xf32> to vector<8x128xf32>
    %c1 = arith.constant 1 : index
    %c0_2 = arith.constant 0 : index
    %c0_3 = arith.constant 0 : index
    %2 = vector.load %arg1[%c1, %c0_2, %c0_3] : memref<2x8x128xf32, #tpu.memory_space<vmem>>, vector<1x8x128xf32>
    %3 = vector.shape_cast %2 : vector<1x8x128xf32> to vector<8x128xf32>
    %4 = math.sin %1 : vector<8x128xf32>
    %5 = math.cos %1 : vector<8x128xf32>
    %6 = math.cos %3 : vector<8x128xf32>
    %7 = arith.mulf %4, %6 : vector<8x128xf32>
    %c0_4 = arith.constant 0 : index
    %c0_5 = arith.constant 0 : index
    %8 = vector.load %arg2[%c0_4, %c0_5] : memref<2x128xf32, #tpu.memory_space<vmem>>, vector<1x128xf32>
    %c1_6 = arith.constant 1 : index
    %c0_7 = arith.constant 0 : index
    %9 = vector.load %arg2[%c1_6, %c0_7] : memref<2x128xf32, #tpu.memory_space<vmem>>, vector<1x128xf32>
    %10 = vector.broadcast %8 : vector<1x128xf32> to vector<8x128xf32>
    %11 = arith.mulf %5, %10 : vector<8x128xf32>
    %12 = vector.broadcast %9 : vector<1x128xf32> to vector<8x128xf32>
    %13 = arith.mulf %7, %12 : vector<8x128xf32>
    %14 = arith.subf %11, %13 : vector<8x128xf32>
    %c0_8 = arith.constant 0 : index
    %c0_9 = arith.constant 0 : index
    %15 = vector.load %arg3[%c0_8, %c0_9] : memref<128x128xf32, #tpu.memory_space<vmem>>, vector<128x128xf32>
    %cst = arith.constant dense<0.000000e+00> : vector<8x128xf32>
    %16 = tpu.matmul %14, %15, %cst {dimension_numbers = #tpu.dot_dimension_numbers<[1], [0], [0], [1], [0, 0, 1, 1], [], []>} : vector<8x128xf32>, vector<128x128xf32>, vector<8x128xf32> -> vector<8x128xf32>
    %c0_10 = arith.constant 0 : index
    %c0_11 = arith.constant 0 : index
    %17 = vector.load %arg4[%c0_10, %c0_11] : memref<1x128xf32, #tpu.memory_space<vmem>>, vector<1x128xf32>
    %18 = vector.broadcast %17 : vector<1x128xf32> to vector<8x128xf32>
    %19 = arith.addf %16, %18 : vector<8x128xf32>
    %cst_12 = arith.constant 0.000000e+00 : f32
    %20 = vector.broadcast %cst_12 : f32 to vector<8x128xf32>
    %21 = arith.cmpf oge, %19, %20 : vector<8x128xf32>
    %cst_13 = arith.constant 1.000000e-01 : f32
    %22 = vector.broadcast %cst_13 : f32 to vector<8x128xf32>
    %23 = arith.mulf %22, %19 : vector<8x128xf32>
    %24 = arith.select %21, %19, %23 : vector<8x128xi1>, vector<8x128xf32>
    %c0_14 = arith.constant 0 : index
    %c0_15 = arith.constant 0 : index
    %25 = vector.load %arg5[%c0_14, %c0_15] : memref<128x128xf32, #tpu.memory_space<vmem>>, vector<128x128xf32>
    %cst_16 = arith.constant dense<0.000000e+00> : vector<8x128xf32>
    %26 = tpu.matmul %24, %25, %cst_16 {dimension_numbers = #tpu.dot_dimension_numbers<[1], [0], [0], [1], [0, 0, 1, 1], [], []>} : vector<8x128xf32>, vector<128x128xf32>, vector<8x128xf32> -> vector<8x128xf32>
    %c0_17 = arith.constant 0 : index
    %c0_18 = arith.constant 0 : index
    %27 = vector.load %arg6[%c0_17, %c0_18] : memref<1x128xf32, #tpu.memory_space<vmem>>, vector<1x128xf32>
    %28 = vector.broadcast %27 : vector<1x128xf32> to vector<8x128xf32>
    %29 = arith.addf %26, %28 : vector<8x128xf32>
    %c0_19 = arith.constant 0 : index
    %c0_20 = arith.constant 0 : index
    %30 = vector.load %arg8[%c0_19, %c0_20] : memref<8x128xf32, #tpu.memory_space<vmem>>, vector<8x128xf32>
    tpu.vector_store %arg8[%c0_19, %c0_20], %29 {strides = array<i32>} : memref<8x128xf32, #tpu.memory_space<vmem>>, vector<8x128xf32>,
    %31 = tpu.iota {dimensions = array<i32: 1>} : vector<8x128xi32>
    %c4_i32 = arith.constant 4 : i32
    %32 = vector.broadcast %c4_i32 : i32 to vector<8x128xi32>
    %33 = arith.cmpi slt, %31, %32 : vector<8x128xi32>
    %cst_21 = arith.constant -1.000000e+30 : f32
    %34 = vector.broadcast %cst_21 : f32 to vector<8x128xf32>
    %35 = arith.select %33, %29, %34 : vector<8x128xi1>, vector<8x128xf32>
    %cst_22 = arith.constant dense<0xFF800000> : vector<8xf32>
    %36 = vector.multi_reduction <maximumf>, %35, %cst_22 [1] : vector<8x128xf32> to vector<8xf32>
    %37 = vector.shape_cast %36 : vector<8xf32> to vector<8x1xf32>
    %38 = vector.broadcast %37 : vector<8x1xf32> to vector<8x128xf32>
    %39 = arith.subf %35, %38 : vector<8x128xf32>
    %40 = math.exp %39 : vector<8x128xf32>
    %cst_23 = arith.constant dense<0.000000e+00> : vector<8xf32>
    %41 = vector.multi_reduction <add>, %40, %cst_23 [1] : vector<8x128xf32> to vector<8xf32>
    %42 = vector.shape_cast %41 : vector<8xf32> to vector<8x1xf32>
    %43 = math.log %42 : vector<8x1xf32>
    %44 = arith.addf %37, %43 : vector<8x1xf32>
    %c0_24 = arith.constant 0 : index
    %c0_25 = arith.constant 0 : index
    %45 = vector.load %arg7[%c0_24, %c0_25] : memref<8x1xi32, #tpu.memory_space<vmem>>, vector<8x1xi32>
    %46 = vector.broadcast %45 : vector<8x1xi32> to vector<8x128xi32>
    %47 = arith.cmpi eq, %31, %46 : vector<8x128xi32>
    %cst_26 = arith.constant 0.000000e+00 : f32
    %48 = vector.broadcast %cst_26 : f32 to vector<8x128xf32>
    %49 = arith.select %47, %29, %48 : vector<8x128xi1>, vector<8x128xf32>
    %cst_27 = arith.constant dense<0.000000e+00> : vector<8xf32>
    %50 = vector.multi_reduction <add>, %49, %cst_27 [1] : vector<8x128xf32> to vector<8xf32>
    %51 = vector.shape_cast %50 : vector<8xf32> to vector<8x1xf32>
    %52 = arith.subf %44, %51 : vector<8x1xf32>
    %53 = tpu.iota {dimensions = array<i32: 0>} : vector<8x1xi32>
    %c8_i32 = arith.constant 8 : i32
    %54 = arith.muli %arg0, %c8_i32 : i32
    %55 = vector.broadcast %54 : i32 to vector<8x1xi32>
    %56 = arith.addi %55, %53 : vector<8x1xi32>
    %c2_i32 = arith.constant 2 : i32
    %57 = vector.broadcast %c2_i32 : i32 to vector<8x1xi32>
    %58 = arith.cmpi slt, %56, %57 : vector<8x1xi32>
    %cst_28 = arith.constant 0.000000e+00 : f32
    %59 = vector.broadcast %cst_28 : f32 to vector<8x1xf32>
    %60 = arith.select %58, %52, %59 : vector<8x1xi1>, vector<8x1xf32>
    %c0_29 = arith.constant 0 : index
    %c0_30 = arith.constant 0 : index
    %61 = vector.load %arg9[%c0_29, %c0_30] : memref<8x1xf32, #tpu.memory_space<vmem>>, vector<8x1xf32>
    tpu.vector_store %arg9[%c0_29, %c0_30], %60 {strides = array<i32>} : memref<8x1xf32, #tpu.memory_space<vmem>>, vector<8x1xf32>,
    return
  }
  func.func @transform_0(%arg0: i32) -> (i32, i32, i32) {
    %c0_i32 = arith.constant 0 : i32
    %c0_i32_0 = arith.constant 0 : i32
    %c0_i32_1 = arith.constant 0 : i32
    return %c0_i32, %arg0, %c0_i32_0 : i32, i32, i32
  }
  func.func @transform_1(%arg0: i32) -> (i32, i32) {
    %c0_i32 = arith.constant 0 : i32
    %c0_i32_0 = arith.constant 0 : i32
    %c0_i32_1 = arith.constant 0 : i32
    return %c0_i32, %c0_i32_0 : i32, i32
  }
  func.func @transform_2(%arg0: i32) -> (i32, i32) {
    %c0_i32 = arith.constant 0 : i32
    %c0_i32_0 = arith.constant 0 : i32
    %c0_i32_1 = arith.constant 0 : i32
    return %c0_i32, %c0_i32_0 : i32, i32
  }
  func.func @transform_3(%arg0: i32) -> (i32, i32) {
    %c0_i32 = arith.constant 0 : i32
    %c0_i32_0 = arith.constant 0 : i32
    %c0_i32_1 = arith.constant 0 : i32
    return %c0_i32, %c0_i32_0 : i32, i32
  }
  func.func @transform_4(%arg0: i32) -> (i32, i32) {
    %c0_i32 = arith.constant 0 : i32
    %c0_i32_0 = arith.constant 0 : i32
    %c0_i32_1 = arith.constant 0 : i32
    return %c0_i32, %c0_i32_0 : i32, i32
  }
  func.func @transform_5(%arg0: i32) -> (i32, i32) {
    %c0_i32 = arith.constant 0 : i32
    %c0_i32_0 = arith.constant 0 : i32
    %c0_i32_1 = arith.constant 0 : i32
    return %c0_i32, %c0_i32_0 : i32, i32
  }
  func.func @transform_6(%arg0: i32) -> (i32, i32) {
    %c0_i32 = arith.constant 0 : i32
    %c0_i32_0 = arith.constant 0 : i32
    return %arg0, %c0_i32 : i32, i32
  }
  func.func @transform_7(%arg0: i32) -> (i32, i32) {
    %c0_i32 = arith.constant 0 : i32
    %c0_i32_0 = arith.constant 0 : i32
    return %arg0, %c0_i32 : i32, i32
  }
  func.func @transform_8(%arg0: i32) -> (i32, i32) {
    %c0_i32 = arith.constant 0 : i32
    %c0_i32_0 = arith.constant 0 : i32
    return %arg0, %c0_i32 : i32, i32
  }
}

</mosaic_0001>

<llo_original>
// kernel: _lambda_.1
$region0: #{_lambda_.1}
  #allocation0 [shape = 'u32[]', space=smem, size = 0x4, offset = 0x4, fixed_abs, tag = 'smem constant byte address 0x4 - core index']
  #allocation1 [shape = 'u32[144,128]{1,0:T(1,128)}', space=vmem, size = 0x12000, scoped, tag = 'internal scratch']
  %s0 = inlined_call_operand.vmem [shape: f32[2,8,128], index: 0, kind: input, shape index: {}]
  %s1 = inlined_call_operand.vmem [shape: f32[2,128], index: 1, kind: input, shape index: {}]
  %s2 = inlined_call_operand.vmem [shape: f32[128,128], index: 2, kind: input, shape index: {}]
  %s3 = inlined_call_operand.vmem [shape: f32[1,128], index: 3, kind: input, shape index: {}]
  %s4 = inlined_call_operand.vmem [shape: f32[128,128], index: 4, kind: input, shape index: {}]
  %s5 = inlined_call_operand.vmem [shape: f32[1,128], index: 5, kind: input, shape index: {}]
  %s6 = inlined_call_operand.vmem [shape: s32[8,1], index: 6, kind: input, shape index: {}]
  %s7 = inlined_call_operand.vmem [shape: f32[8,128], index: 7, kind: output, shape index: {0}]
  %s8 = inlined_call_operand.vmem [shape: f32[8,1], index: 8, kind: output, shape index: {1}]
  %9 = xla_tuple %s7, %s8
  %s10 = sld [smem:[#allocation0]]
  $region46: #{_lambda_.1} parent=0
    _
  %s12 = ssub.s32 1, %s10
  %s13 = scalar_select 0, %s12, %s10
  // Predicated region
  $region2: #{_lambda_.1} parent=0 // pred_check
    _
  $region3: #{_lambda_.1} parent=0 // pred_check_branch
    %15 = sbr.rel (0) target = $region5
  $region4: #{_lambda_.1} parent=0 // pred_region
    _
  $region5: #{_lambda_.1} parent=0 // pred_fallthru
    _
  // Predicated region
  $region6: #{_lambda_.1} parent=0 // pred_check
    _
  $region7: #{_lambda_.1} parent=0 // pred_check_branch
    %17 = sbr.rel (0) target = $region9
  $region8: #{_lambda_.1} parent=0 // pred_region
    _
  $region9: #{_lambda_.1} parent=0 // pred_fallthru
    _
  // Predicated region
  $region10: #{_lambda_.1} parent=0 // pred_check
    _
  $region11: #{_lambda_.1} parent=0 // pred_check_branch
    %19 = sbr.rel (0) target = $region13
  $region12: #{_lambda_.1} parent=0 // pred_region
    _
  $region13: #{_lambda_.1} parent=0 // pred_fallthru
    _
  // Predicated region
  $region14: #{_lambda_.1} parent=0 // pred_check
    _
  $region15: #{_lambda_.1} parent=0 // pred_check_branch
    %21 = sbr.rel (0) target = $region17
  $region16: #{_lambda_.1} parent=0 // pred_region
    _
  $region17: #{_lambda_.1} parent=0 // pred_fallthru
    _
  // Predicated region
  $region18: #{_lambda_.1} parent=0 // pred_check
    _
  $region19: #{_lambda_.1} parent=0 // pred_check_branch
    %23 = sbr.rel (0) target = $region21
  $region20: #{_lambda_.1} parent=0 // pred_region
    _
  $region21: #{_lambda_.1} parent=0 // pred_fallthru
    _
  // Predicated region
  $region22: #{_lambda_.1} parent=0 // pred_check
    _
  $region23: #{_lambda_.1} parent=0 // pred_check_branch
    %25 = sbr.rel (0) target = $region25
  $region24: #{_lambda_.1} parent=0 // pred_region
    _
  $region25: #{_lambda_.1} parent=0 // pred_fallthru
    _
  // Predicated region
  $region26: #{_lambda_.1} parent=0 // pred_check
    _
  $region27: #{_lambda_.1} parent=0 // pred_check_branch
    %27 = sbr.rel (0) target = $region29
  $region28: #{_lambda_.1} parent=0 // pred_region
    _
  $region29: #{_lambda_.1} parent=0 // pred_fallthru
    _
  %v28 = vld [vmem:[%s0] sm:$0xff]
  %s29 = scalar_lea.vmem %s0, 8
  %v30 = vld [vmem:[%s29] sm:$0xff]
  %v31 = vand.u32 2147483647, %v28
  %vm32 = vcmp.le.f32.partialorder %v31, 0.7853982
  %vm33 = vcmp.lt.s32.totalorder %v28, 0
  %v34 = vand.u32 %v28, 2139095040
  %v35 = vshrl.u32 %v34, 23
  %v36 = vsub.s32 %v35, 127
  %v37 = vand.u32 2147483647, %v28
  %v38 = vand.u32 %v37, 8388607
  %v39 = vor.u32 %v38, 8388608
  %v40 = vsub.s32 0, %v39
  %v41 = vadd.s32 %v36, 1
  %vm42 = vcmp.gt.s32.totalorder %v41, 0
  %v43 = vsel %vm42, %v41, 0
  %v44 = vshrl.u32 %v43, 5
  %v45 = vand.u32 %v43, 31
  %v46 = vsub.s32 32, %v45
  %v47 = vshrl.u32 683565275, %v46
  %v48 = vshll.u32 683565275, %v45
  %v49 = vshrl.u32 2475754826, %v46
  %v50 = vor.u32 %v48, %v49
  %v51 = vshll.u32 2475754826, %v45
  %v52 = vshrl.u32 2131351028, %v46
  %v53 = vor.u32 %v51, %v52
  %v54 = vshll.u32 2131351028, %v45
  %v55 = vshrl.u32 2102212464, %v46
  %v56 = vor.u32 %v54, %v55
  %v57 = vshll.u32 2102212464, %v45
  %v58 = vshrl.u32 920167782, %v46
  %v59 = vor.u32 %v57, %v58
  %v60 = vshll.u32 920167782, %v45
  %v61 = vshrl.u32 1326507024, %v46
  %v62 = vor.u32 %v60, %v61
  %vm63 = vcmp.lt.s32.totalorder %v44, 1
  %vm64 = vcmp.lt.s32.totalorder %v44, 2
  %vm65 = vcmp.lt.s32.totalorder %v44, 3
  %vm66 = vcmp.lt.s32.totalorder %v44, 4
  %v67 = vsel %vm63, %v47, %v50
  %v68 = vsel %vm66, %v56, 2102212464
  %v69 = vsel %vm65, %v53, %v68
  %v70 = vsel %vm64, %v67, %v69
  %v71 = vsel %vm63, %v50, %v53
  %v72 = vsel %vm66, %v59, 920167782
  %v73 = vsel %vm65, %v56, %v72
  %v74 = vsel %vm64, %v71, %v73
  %v75 = vsel %vm63, %v53, %v56
  %v76 = vsel %vm66, %v62, 1326507024
  %v77 = vsel %vm65, %v59, %v76
  %v78 = vsel %vm64, %v75, %v77
  %v79 = vshll.u32 %v39, 8
  %v80 = vmul.u32.u64.compose %v79, %v78
  %v81 = vextract.low.u32 %v80
  %v82 = vextract.high.u32 %v80
  %v83 = vmul.u32.u64.compose %v79, %v74
  %v84 = vextract.low.u32 %v83
  %v85 = vextract.high.u32 %v83
  %v86 = vmul.u32 %v79, %v70
  %v87 = vadd.s32 %v82, %v84
  %vm88 = vc.u32 %v82, %v84
  %v89 = vadd.s32 %v85, 1
  %v90 = vsel %vm88, %v89, %v85
  %v91 = vadd.s32 %v86, %v90
  %v92 = vadd.s32 %v91, 536870912
  %v93 = vshrl.u32 %v92, 30
  %v94 = vshll.u32 %v93, 30
  %v95 = vsub.s32 %v91, %v94
  %vm96 = vcmp.lt.s32.totalorder %v95, 0
  %v97 = vsub.s32 0, %v95
  %v98 = vsel %vm96, %v97, %v95
  %v99 = vclz %v98
  %v100 = vsub.s32 %v99, 2
  %vm101 = vcmp.gt.s32.totalorder 0, %v100
  %v102 = vsel %vm101, 0, %v100
  %v103 = vsub.s32 32, %v102
  %v104 = vshll.u32 %v95, %v102
  %v105 = vshrl.u32 %v87, %v103
  %v106 = vor.u32 %v104, %v105
  %v107 = vsub.s32 4294967266, %v102
  %v108 = vadd.s32 %v107, 127
  %v109 = vshll.u32 %v108, 23
  %v110 = vor.u32 4788187, %v109
  %v111 = vand.u32 2147483647, %v110
  %v113 = vcvt.s32.f32 %v106
  %v114 = vmul.f32 %v113, %v111
  %v115 = vxor.u32 %v114, 2147483648
  %v116 = vsel %vm33, %v115, %v114
  %v117 = vsub.s32 4, %v93
  %v118 = vsel %vm33, %v117, %v93
  %v119 = vsel %vm32, %v28, %v116
  %v120 = vsel %vm32, 0, %v118
  %v121 = vcosq.f32.pop %v119
  %v122 = vsinq.f32.pop %v119
  %vm123 = vweird.f32 %v28
  %v124 = vadd.s32 %v120, 3
  %v125 = vand.u32 %v124, 3
  %vm126 = vcmp.lt.s32.totalorder %v125, 2
  %vm127 = vcmp.eq.s32.totalorder %v125, 0
  %v128 = vxor.u32 %v122, 2147483648
  %v129 = vsel %vm127, %v121, %v128
  %vm130 = vcmp.eq.s32.totalorder %v125, 2
  %v131 = vxor.u32 %v121, 2147483648
  %v132 = vsel %vm130, %v131, %v122
  %v133 = vsel %vm126, %v129, %v132
  %v134 = vsel %vm123, nan, %v133
  %v135 = vand.u32 2147483647, %v28
  %vm136 = vcmp.le.f32.partialorder %v135, 0.7853982
  %vm137 = vcmp.lt.s32.totalorder %v28, 0
  %v138 = vand.u32 %v28, 2139095040
  %v139 = vshrl.u32 %v138, 23
  %v140 = vsub.s32 %v139, 127
  %v141 = vand.u32 2147483647, %v28
  %v142 = vand.u32 %v141, 8388607
  %v143 = vor.u32 %v142, 8388608
  %v144 = vsub.s32 0, %v143
  %v145 = vadd.s32 %v140, 1
  %vm146 = vcmp.gt.s32.totalorder %v145, 0
  %v147 = vsel %vm146, %v145, 0
  %v148 = vshrl.u32 %v147, 5
  %v149 = vand.u32 %v147, 31
  %v150 = vsub.s32 32, %v149
  %v151 = vshrl.u32 683565275, %v150
  %v152 = vshll.u32 683565275, %v149
  %v153 = vshrl.u32 2475754826, %v150
  %v154 = vor.u32 %v152, %v153
  %v155 = vshll.u32 2475754826, %v149
  %v156 = vshrl.u32 2131351028, %v150
  %v157 = vor.u32 %v155, %v156
  %v158 = vshll.u32 2131351028, %v149
  %v159 = vshrl.u32 2102212464, %v150
  %v160 = vor.u32 %v158, %v159
  %v161 = vshll.u32 2102212464, %v149
  %v162 = vshrl.u32 920167782, %v150
  %v163 = vor.u32 %v161, %v162
  %v164 = vshll.u32 920167782, %v149
  %v165 = vshrl.u32 1326507024, %v150
  %v166 = vor.u32 %v164, %v165
  %vm167 = vcmp.lt.s32.totalorder %v148, 1
  %vm168 = vcmp.lt.s32.totalorder %v148, 2
  %vm169 = vcmp.lt.s32.totalorder %v148, 3
  %vm170 = vcmp.lt.s32.totalorder %v148, 4
  %v171 = vsel %vm167, %v151, %v154
  %v172 = vsel %vm170, %v160, 2102212464
  %v173 = vsel %vm169, %v157, %v172
  %v174 = vsel %vm168, %v171, %v173
  %v175 = vsel %vm167, %v154, %v157
  %v176 = vsel %vm170, %v163, 920167782
  %v177 = vsel %vm169, %v160, %v176
  %v178 = vsel %vm168, %v175, %v177
  %v179 = vsel %vm167, %v157, %v160
  %v180 = vsel %vm170, %v166, 1326507024
  %v181 = vsel %vm169, %v163, %v180
  %v182 = vsel %vm168, %v179, %v181
  %v183 = vshll.u32 %v143, 8
  %v184 = vmul.u32.u64.compose %v183, %v182
  %v185 = vextract.low.u32 %v184
  %v186 = vextract.high.u32 %v184
  %v187 = vmul.u32.u64.compose %v183, %v178
  %v188 = vextract.low.u32 %v187
  %v189 = vextract.high.u32 %v187
  %v190 = vmul.u32 %v183, %v174
  %v191 = vadd.s32 %v186, %v188
  %vm192 = vc.u32 %v186, %v188
  %v193 = vadd.s32 %v189, 1
  %v194 = vsel %vm192, %v193, %v189
  %v195 = vadd.s32 %v190, %v194
  %v196 = vadd.s32 %v195, 536870912
  %v197 = vshrl.u32 %v196, 30
  %v198 = vshll.u32 %v197, 30
  %v199 = vsub.s32 %v195, %v198
  %vm200 = vcmp.lt.s32.totalorder %v199, 0
  %v201 = vsub.s32 0, %v199
  %v202 = vsel %vm200, %v201, %v199
  %v203 = vclz %v202
  %v204 = vsub.s32 %v203, 2
  %vm205 = vcmp.gt.s32.totalorder 0, %v204
  %v206 = vsel %vm205, 0, %v204
  %v207 = vsub.s32 32, %v206
  %v208 = vshll.u32 %v199, %v206
  %v209 = vshrl.u32 %v191, %v207
  %v210 = vor.u32 %v208, %v209
  %v211 = vsub.s32 4294967266, %v206
  %v212 = vadd.s32 %v211, 127
  %v213 = vshll.u32 %v212, 23
  %v214 = vor.u32 4788187, %v213
  %v215 = vand.u32 2147483647, %v214
  %v217 = vcvt.s32.f32 %v210
  %v218 = vmul.f32 %v217, %v215
  %v219 = vxor.u32 %v218, 2147483648
  %v220 = vsel %vm137, %v219, %v218
  %v221 = vsub.s32 4, %v197
  %v222 = vsel %vm137, %v221, %v197
  %v223 = vsel %vm136, %v28, %v220
  %v224 = vsel %vm136, 0, %v222
  %v225 = vcosq.f32.pop %v223
  %v226 = vsinq.f32.pop %v223
  %vm227 = vweird.f32 %v28
  %v228 = vand.u32 %v224, 3
  %vm229 = vcmp.lt.s32.totalorder %v228, 2
  %vm230 = vcmp.eq.s32.totalorder %v228, 0
  %v231 = vxor.u32 %v226, 2147483648
  %v232 = vsel %vm230, %v225, %v231
  %vm233 = vcmp.eq.s32.totalorder %v228, 2
  %v234 = vxor.u32 %v225, 2147483648
  %v235 = vsel %vm233, %v234, %v226
  %v236 = vsel %vm229, %v232, %v235
  %v237 = vsel %vm227, nan, %v236
  %v238 = vand.u32 2147483647, %v30
  %vm239 = vcmp.le.f32.partialorder %v238, 0.7853982
  %vm240 = vcmp.lt.s32.totalorder %v30, 0
  %v241 = vand.u32 %v30, 2139095040
  %v242 = vshrl.u32 %v241, 23
  %v243 = vsub.s32 %v242, 127
  %v244 = vand.u32 2147483647, %v30
  %v245 = vand.u32 %v244, 8388607
  %v246 = vor.u32 %v245, 8388608
  %v247 = vsub.s32 0, %v246
  %v248 = vadd.s32 %v243, 1
  %vm249 = vcmp.gt.s32.totalorder %v248, 0
  %v250 = vsel %vm249, %v248, 0
  %v251 = vshrl.u32 %v250, 5
  %v252 = vand.u32 %v250, 31
  %v253 = vsub.s32 32, %v252
  %v254 = vshrl.u32 683565275, %v253
  %v255 = vshll.u32 683565275, %v252
  %v256 = vshrl.u32 2475754826, %v253
  %v257 = vor.u32 %v255, %v256
  %v258 = vshll.u32 2475754826, %v252
  %v259 = vshrl.u32 2131351028, %v253
  %v260 = vor.u32 %v258, %v259
  %v261 = vshll.u32 2131351028, %v252
  %v262 = vshrl.u32 2102212464, %v253
  %v263 = vor.u32 %v261, %v262
  %v264 = vshll.u32 2102212464, %v252
  %v265 = vshrl.u32 920167782, %v253
  %v266 = vor.u32 %v264, %v265
  %v267 = vshll.u32 920167782, %v252
  %v268 = vshrl.u32 1326507024, %v253
  %v269 = vor.u32 %v267, %v268
  %vm270 = vcmp.lt.s32.totalorder %v251, 1
  %vm271 = vcmp.lt.s32.totalorder %v251, 2
  %vm272 = vcmp.lt.s32.totalorder %v251, 3
  %vm273 = vcmp.lt.s32.totalorder %v251, 4
  %v274 = vsel %vm270, %v254, %v257
  %v275 = vsel %vm273, %v263, 2102212464
  %v276 = vsel %vm272, %v260, %v275
  %v277 = vsel %vm271, %v274, %v276
  %v278 = vsel %vm270, %v257, %v260
  %v279 = vsel %vm273, %v266, 920167782
  %v280 = vsel %vm272, %v263, %v279
  %v281 = vsel %vm271, %v278, %v280
  %v282 = vsel %vm270, %v260, %v263
  %v283 = vsel %vm273, %v269, 1326507024
  %v284 = vsel %vm272, %v266, %v283
  %v285 = vsel %vm271, %v282, %v284
  %v286 = vshll.u32 %v246, 8
  %v287 = vmul.u32.u64.compose %v286, %v285
  %v288 = vextract.low.u32 %v287
  %v289 = vextract.high.u32 %v287
  %v290 = vmul.u32.u64.compose %v286, %v281
  %v291 = vextract.low.u32 %v290
  %v292 = vextract.high.u32 %v290
  %v293 = vmul.u32 %v286, %v277
  %v294 = vadd.s32 %v289, %v291
  %vm295 = vc.u32 %v289, %v291
  %v296 = vadd.s32 %v292, 1
  %v297 = vsel %vm295, %v296, %v292
  %v298 = vadd.s32 %v293, %v297
  %v299 = vadd.s32 %v298, 536870912
  %v300 = vshrl.u32 %v299, 30
  %v301 = vshll.u32 %v300, 30
  %v302 = vsub.s32 %v298, %v301
  %vm303 = vcmp.lt.s32.totalorder %v302, 0
  %v304 = vsub.s32 0, %v302
  %v305 = vsel %vm303, %v304, %v302
  %v306 = vclz %v305
  %v307 = vsub.s32 %v306, 2
  %vm308 = vcmp.gt.s32.totalorder 0, %v307
  %v309 = vsel %vm308, 0, %v307
  %v310 = vsub.s32 32, %v309
  %v311 = vshll.u32 %v302, %v309
  %v312 = vshrl.u32 %v294, %v310
  %v313 = vor.u32 %v311, %v312
  %v314 = vsub.s32 4294967266, %v309
  %v315 = vadd.s32 %v314, 127
  %v316 = vshll.u32 %v315, 23
  %v317 = vor.u32 4788187, %v316
  %v318 = vand.u32 2147483647, %v317
  %v320 = vcvt.s32.f32 %v313
  %v321 = vmul.f32 %v320, %v318
  %v322 = vxor.u32 %v321, 2147483648
  %v323 = vsel %vm240, %v322, %v321
  %v324 = vsub.s32 4, %v300
  %v325 = vsel %vm240, %v324, %v300
  %v326 = vsel %vm239, %v30, %v323
  %v327 = vsel %vm239, 0, %v325
  %v328 = vcosq.f32.pop %v326
  %v329 = vsinq.f32.pop %v326
  %vm330 = vweird.f32 %v30
  %v331 = vand.u32 %v327, 3
  %vm332 = vcmp.lt.s32.totalorder %v331, 2
  %vm333 = vcmp.eq.s32.totalorder %v331, 0
  %v334 = vxor.u32 %v329, 2147483648
  %v335 = vsel %vm333, %v328, %v334
  %vm336 = vcmp.eq.s32.totalorder %v331, 2
  %v337 = vxor.u32 %v328, 2147483648
  %v338 = vsel %vm336, %v337, %v329
  %v339 = vsel %vm332, %v335, %v338
  %v340 = vsel %vm330, nan, %v339
  %v341 = vmul.f32 %v134, %v340
  %v342 = vld [vmem:[%s1] sm:$0x1]
  %v343 = vld [vmem:[%s1 + $0x1] sm:$0x1]
  %v344 = vlaneseq
  %v345 = vshrl.u32 %v344, 7
  %v346 = vsub.s32 0, %v345
  %v347 = vrot.slane %v342, %v346
  %v348 = vmul.f32 %v237, %v347
  %v349 = vlaneseq
  %v350 = vshrl.u32 %v349, 7
  %v351 = vsub.s32 0, %v350
  %v352 = vrot.slane %v343, %v351
  %v353 = vmul.f32 %v341, %v352
  %v354 = vsub.f32 %v348, %v353
  %v355 = vld [vmem:[%s2] sm:$0xff]
  %v356 = vld [vmem:[%s2 + $0x8] sm:$0xff]
  %v357 = vld [vmem:[%s2 + $0x10] sm:$0xff]
  %v358 = vld [vmem:[%s2 + $0x18] sm:$0xff]
  %v359 = vld [vmem:[%s2 + $0x20] sm:$0xff]
  %v360 = vld [vmem:[%s2 + $0x28] sm:$0xff]
  %v361 = vld [vmem:[%s2 + $0x30] sm:$0xff]
  %v362 = vld [vmem:[%s2 + $0x38] sm:$0xff]
  %v363 = vld [vmem:[%s2 + $0x40] sm:$0xff]
  %v364 = vld [vmem:[%s2 + $0x48] sm:$0xff]
  %v365 = vld [vmem:[%s2 + $0x50] sm:$0xff]
  %v366 = vld [vmem:[%s2 + $0x58] sm:$0xff]
  %v367 = vld [vmem:[%s2 + $0x60] sm:$0xff]
  %v368 = vld [vmem:[%s2 + $0x68] sm:$0xff]
  %v369 = vld [vmem:[%s2 + $0x70] sm:$0xff]
  %v370 = vld [vmem:[%s2 + $0x78] sm:$0xff]
  %v371 = vld [vmem:[%s3] sm:$0x1]
  %v373 = vlaneseq
  %v374 = vshrl.u32 %v373, 7
  %v375 = vsub.s32 0, %v374
  %v376 = vrot.slane %v371, %v375
  %378 = vmatprep.subr.mxu0 0.0
  %379 = vmatpush1.msra.mxu0 %v370
  %380 = vmatprep.subr.mxu0 0.0
  %381 = vmatpush1.msra.mxu0 %v369
  %382 = vmatprep.subr.mxu0 0.0
  %383 = vmatpush1.msra.mxu0 %v368
  %384 = vmatprep.subr.mxu0 0.0
  %385 = vmatpush1.msra.mxu0 %v367
  %386 = vmatprep.subr.mxu0 0.0
  %387 = vmatpush1.msra.mxu0 %v366
  %388 = vmatprep.subr.mxu0 0.0
  %389 = vmatpush1.msra.mxu0 %v365
  %390 = vmatprep.subr.mxu0 0.0
  %391 = vmatpush1.msra.mxu0 %v364
  %392 = vmatprep.subr.mxu0 0.0
  %393 = vmatpush1.msra.mxu0 %v363
  %394 = vmatprep.subr.mxu0 0.0
  %395 = vmatpush1.msra.mxu0 %v362
  %396 = vmatprep.subr.mxu0 0.0
  %397 = vmatpush1.msra.mxu0 %v361
  %398 = vmatprep.subr.mxu0 0.0
  %399 = vmatpush1.msra.mxu0 %v360
  %400 = vmatprep.subr.mxu0 0.0
  %401 = vmatpush1.msra.mxu0 %v359
  %402 = vmatprep.subr.mxu0 0.0
  %403 = vmatpush1.msra.mxu0 %v358
  %404 = vmatprep.subr.mxu0 0.0
  %405 = vmatpush1.msra.mxu0 %v357
  %406 = vmatprep.subr.mxu0 0.0
  %407 = vmatpush1.msra.mxu0 %v356
  %408 = vmatprep.subr.mxu0 0.0
  %409 = vmatpush1.msra.mxu0 %v355
  %410 = vmatprep.subr.mxu0 0.0
  %411 = vmatpush2.msra.mxu0 0.0
  %412 = vmatprep.subr.mxu0 0.0
  %413 = vmatpush2.msra.mxu0 0.0
  %414 = vmatprep.subr.mxu0 0.0
  %415 = vmatpush2.msra.mxu0 0.0
  %416 = vmatprep.subr.mxu0 0.0
  %417 = vmatpush2.msra.mxu0 0.0
  %418 = vmatprep.subr.mxu0 0.0
  %419 = vmatpush2.msra.mxu0 0.0
  %420 = vmatprep.subr.mxu0 0.0
  %421 = vmatpush2.msra.mxu0 0.0
  %422 = vmatprep.subr.mxu0 0.0
  %423 = vmatpush2.msra.mxu0 0.0
  %424 = vmatprep.subr.mxu0 0.0
  %425 = vmatpush2.msra.mxu0 0.0
  %426 = vmatprep.subr.mxu0 0.0
  %427 = vmatpush2.msra.mxu0 0.0
  %428 = vmatprep.subr.mxu0 0.0
  %429 = vmatpush2.msra.mxu0 0.0
  %430 = vmatprep.subr.mxu0 0.0
  %431 = vmatpush2.msra.mxu0 0.0
  %432 = vmatprep.subr.mxu0 0.0
  %433 = vmatpush2.msra.mxu0 0.0
  %434 = vmatprep.subr.mxu0 0.0
  %435 = vmatpush2.msra.mxu0 0.0
  %436 = vmatprep.subr.mxu0 0.0
  %437 = vmatpush2.msra.mxu0 0.0
  %438 = vmatprep.subr.mxu0 0.0
  %439 = vmatpush2.msra.mxu0 0.0
  %440 = vmatprep.subr.mxu0 0.0
  %441 = vmatpush2.msra.mxu0 0.0
  %442 = vmatprep.mubr.f32.mxu0 0.0
  %443 = vmatmul.mubr.f32.gmra.mxu0 %v354
  %v444 = vpop.f32.mrf.mxu0
  %v445 = vadd.f32 %v376, %v444
  %v446 = vpop.f32.mrf.mxu0
  %447 = vdwg.mxu0
  %vm448 = vcmp.ge.f32.partialorder %v445, 0.0
  %v449 = vmul.f32 %v445, 0.1
  %v450 = vsel %vm448, %v445, %v449
  %v451 = vld [vmem:[%s4] sm:$0xff]
  %v452 = vld [vmem:[%s4 + $0x8] sm:$0xff]
  %v453 = vld [vmem:[%s4 + $0x10] sm:$0xff]
  %v454 = vld [vmem:[%s4 + $0x18] sm:$0xff]
  %v455 = vld [vmem:[%s4 + $0x20] sm:$0xff]
  %v456 = vld [vmem:[%s4 + $0x28] sm:$0xff]
  %v457 = vld [vmem:[%s4 + $0x30] sm:$0xff]
  %v458 = vld [vmem:[%s4 + $0x38] sm:$0xff]
  %v459 = vld [vmem:[%s4 + $0x40] sm:$0xff]
  %v460 = vld [vmem:[%s4 + $0x48] sm:$0xff]
  %v461 = vld [vmem:[%s4 + $0x50] sm:$0xff]
  %v462 = vld [vmem:[%s4 + $0x58] sm:$0xff]
  %v463 = vld [vmem:[%s4 + $0x60] sm:$0xff]
  %v464 = vld [vmem:[%s4 + $0x68] sm:$0xff]
  %v465 = vld [vmem:[%s4 + $0x70] sm:$0xff]
  %v466 = vld [vmem:[%s4 + $0x78] sm:$0xff]
  %v467 = vld [vmem:[%s5] sm:$0x1]
  %v469 = vlaneseq
  %v470 = vshrl.u32 %v469, 7
  %v471 = vsub.s32 0, %v470
  %v472 = vrot.slane %v467, %v471
  %474 = vmatprep.subr.mxu0 0.0
  %475 = vmatpush1.msra.mxu0 %v466
  %476 = vmatprep.subr.mxu0 0.0
  %477 = vmatpush1.msra.mxu0 %v465
  %478 = vmatprep.subr.mxu0 0.0
  %479 = vmatpush1.msra.mxu0 %v464
  %480 = vmatprep.subr.mxu0 0.0
  %481 = vmatpush1.msra.mxu0 %v463
  %482 = vmatprep.subr.mxu0 0.0
  %483 = vmatpush1.msra.mxu0 %v462
  %484 = vmatprep.subr.mxu0 0.0
  %485 = vmatpush1.msra.mxu0 %v461
  %486 = vmatprep.subr.mxu0 0.0
  %487 = vmatpush1.msra.mxu0 %v460
  %488 = vmatprep.subr.mxu0 0.0
  %489 = vmatpush1.msra.mxu0 %v459
  %490 = vmatprep.subr.mxu0 0.0
  %491 = vmatpush1.msra.mxu0 %v458
  %492 = vmatprep.subr.mxu0 0.0
  %493 = vmatpush1.msra.mxu0 %v457
  %494 = vmatprep.subr.mxu0 0.0
  %495 = vmatpush1.msra.mxu0 %v456
  %496 = vmatprep.subr.mxu0 0.0
  %497 = vmatpush1.msra.mxu0 %v455
  %498 = vmatprep.subr.mxu0 0.0
  %499 = vmatpush1.msra.mxu0 %v454
  %500 = vmatprep.subr.mxu0 0.0
  %501 = vmatpush1.msra.mxu0 %v453
  %502 = vmatprep.subr.mxu0 0.0
  %503 = vmatpush1.msra.mxu0 %v452
  %504 = vmatprep.subr.mxu0 0.0
  %505 = vmatpush1.msra.mxu0 %v451
  %506 = vmatprep.subr.mxu0 0.0
  %507 = vmatpush2.msra.mxu0 0.0
  %508 = vmatprep.subr.mxu0 0.0
  %509 = vmatpush2.msra.mxu0 0.0
  %510 = vmatprep.subr.mxu0 0.0
  %511 = vmatpush2.msra.mxu0 0.0
  %512 = vmatprep.subr.mxu0 0.0
  %513 = vmatpush2.msra.mxu0 0.0
  %514 = vmatprep.subr.mxu0 0.0
  %515 = vmatpush2.msra.mxu0 0.0
  %516 = vmatprep.subr.mxu0 0.0
  %517 = vmatpush2.msra.mxu0 0.0
  %518 = vmatprep.subr.mxu0 0.0
  %519 = vmatpush2.msra.mxu0 0.0
  %520 = vmatprep.subr.mxu0 0.0
  %521 = vmatpush2.msra.mxu0 0.0
  %522 = vmatprep.subr.mxu0 0.0
  %523 = vmatpush2.msra.mxu0 0.0
  %524 = vmatprep.subr.mxu0 0.0
  %525 = vmatpush2.msra.mxu0 0.0
  %526 = vmatprep.subr.mxu0 0.0
  %527 = vmatpush2.msra.mxu0 0.0
  %528 = vmatprep.subr.mxu0 0.0
  %529 = vmatpush2.msra.mxu0 0.0
  %530 = vmatprep.subr.mxu0 0.0
  %531 = vmatpush2.msra.mxu0 0.0
  %532 = vmatprep.subr.mxu0 0.0
  %533 = vmatpush2.msra.mxu0 0.0
  %534 = vmatprep.subr.mxu0 0.0
  %535 = vmatpush2.msra.mxu0 0.0
  %536 = vmatprep.subr.mxu0 0.0
  %537 = vmatpush2.msra.mxu0 0.0
  %538 = vmatprep.mubr.f32.mxu0 0.0
  %539 = vmatmul.mubr.f32.gmra.mxu0 %v450
  %v540 = vpop.f32.mrf.mxu0
  %v541 = vadd.f32 %v472, %v540
  %v542 = vpop.f32.mrf.mxu0
  %543 = vdwg.mxu0
  %544 = vst [vmem:[%s7] sm:$0xff] %v541
  %v545 = vlaneseq
  %v546 = vand.u32 %v545, 127
  %vm547 = vcmp.lt.s32.totalorder %v546, 4
  %v548 = vsel %vm547, %v541, -1e+30
  %549 = vmax.xlane.f32.xlu0 %v548
  %v550 = vpop.xlane.xlu0 %549
  %v551 = vsub.f32 %v548, %v550
  %v552 = vmul.f32 %v551, 1.442695
  %v553 = vpow.pop %v552
  %554 = vadd.xlane.f32.xlu0 %v553
  %v555 = vpop.xlane.xlu0 %554
  %v556 = vlog2.pop %v555
  %v557 = vmul.f32 %v556, 0.6931472
  %v558 = vadd.f32 %v550, %v557
  %v559 = vld [vmem:[%s6] sm:$0xff]
  %560 = vset.pattern.permute.xlu0 0
  %561 = vperm.xlu0 %560, %v559
  %v562 = vpop.permute.xlu0 %561
  %vm563 = vcmp.eq.s32.totalorder %v546, %v562
  %v564 = vsel %vm563, %v541, 0.0
  %565 = vadd.xlane.f32.xlu0 %v564
  %v566 = vpop.xlane.xlu0 %565
  %v567 = vsub.f32 %v558, %v566
  %v568 = vlaneseq
  %v569 = vshrl.u32 %v568, 7
  %s570 = smul.u32 0, 8
  %v571 = vstv %s570
  %v572 = vadd.s32 %v571, %v569
  %vm573 = vcmp.lt.s32.totalorder %v572, 2
  %v574 = vsel %vm573, %v567, 0.0
  %vm575 = vcmask 7168
  %576 = vst.msk [vmem:[%s8] sm:$0xff] %vm575, %v574
  // Predicated region
  $region30: #{_lambda_.1} parent=0 // pred_check
    _
  $region31: #{_lambda_.1} parent=0 // pred_check_branch
    %578 = sbr.rel (0) target = $region33
  $region32: #{_lambda_.1} parent=0 // pred_region
    _
  $region33: #{_lambda_.1} parent=0 // pred_fallthru
    _
  // Predicated region
  $region34: #{_lambda_.1} parent=0 // pred_check
    _
  $region35: #{_lambda_.1} parent=0 // pred_check_branch
    %580 = sbr.rel (0) target = $region37
  $region36: #{_lambda_.1} parent=0 // pred_region
    _
  $region37: #{_lambda_.1} parent=0 // pred_fallthru
    _
  // Predicated region
  $region38: #{_lambda_.1} parent=0 // pred_check
    _
  $region39: #{_lambda_.1} parent=0 // pred_check_branch
    %582 = sbr.rel (0) target = $region41
  $region40: #{_lambda_.1} parent=0 // pred_region
    _
  $region41: #{_lambda_.1} parent=0 // pred_fallthru
    _
  // Predicated region
  $region42: #{_lambda_.1} parent=0 // pred_check
    _
  $region43: #{_lambda_.1} parent=0 // pred_check_branch
    %584 = sbr.rel (0) target = $region45
  $region44: #{_lambda_.1} parent=0 // pred_region
    _
  $region45: #{_lambda_.1} parent=0 // pred_fallthru
    _

</llo_original>
